<compile_context>
chip_gen: v7x
topology: tpu7x:2x2x1
jax: 0.10.0
libtpu: 0.0.40
codegen_flags: <defaults>
</compile_context>

<pallas_src>
import jax
import jax.numpy as jnp
from jax.experimental import pallas as pl
from jax.experimental.pallas import tpu as pltpu


def _round_up(x, m):
    return ((x + m - 1) // m) * m


def _pick_tile(total, target):
    """Largest multiple of 128 that is <= min(target, total) and divides `total`
    (`total` must itself be a multiple of 128)."""
    t = min(target, total)
    while total % t != 0:
        t -= 128
    return t


# --------------------------- Pass 1: first MLP --------------------------- #
def mlp_f_kernel(x_ref, wf_ref, bf_ref, hf_ref, hb_ref):
    acc = jnp.dot(x_ref[...], wf_ref[...], preferred_element_type=jnp.float32)
    h = jnp.maximum(acc + bf_ref[...], 0.0)
    hf_ref[...] = h                          # f32 copy: exact eps*h in the epilogue
    hb_ref[...] = h.astype(jnp.bfloat16)     # bf16 copy: streamed through aggregation


# ---------- Pass 2: bf16 aggregation + combine + second MLP --------------- #
def gin_agg_kernel(eps_ref, adj_ref, hsrc_ref, hdst_ref, wp_ref, bp_ref,
                   o_ref, acc_ref):
    k = pl.program_id(1)

    @pl.when(k == 0)
    def _init():
        acc_ref[...] = jnp.zeros_like(acc_ref)

    # Hot loop: one bf16 x bf16 MXU matmul accumulated in f32.  adj is a lossless
    # 0/1 bf16 stream, so the reduction only picks up bf16 rounding of h.
    acc_ref[...] += jnp.dot(adj_ref[...], hsrc_ref[...],
                            preferred_element_type=jnp.float32)

    @pl.when(k == pl.num_programs(1) - 1)
    def _epilogue():
        eps = eps_ref[0]
        # Combine exactly as written in the PyTorch module: 1 + eps*h + n
        h2 = 1.0 + eps * hdst_ref[...] + acc_ref[...]
        out = jnp.dot(h2, wp_ref[...], preferred_element_type=jnp.float32)
        o_ref[...] = jnp.maximum(out + bp_ref[...], 0.0)


def gin_forward(eps, adj, feats, w_f, b_f, w_phy, b_phy):
    """eps: (1,1) f32; adj: (N,N) {0,1} with adj[dst,src]=1; feats: (N,in_dim);
    w_f: (in_dim,out_dim); b_f: (1,out_dim); w_phy: (out_dim,out_dim); b_phy: (1,out_dim)."""
    N, in_dim = feats.shape
    out_dim = w_f.shape[1]
    f32, bf16 = jnp.float32, jnp.bfloat16

    # Lane-dense padded dims; padded entries are zero so the sliced result is exact.
    dip = _round_up(in_dim, 128)
    # out_dim > 128: align to 256 so both matmuls use the full 256-wide MXU (v6e/v7x).
    dp = _round_up(out_dim, 128) if out_dim <= 128 else _round_up(out_dim, 256)

    # Node padding: multiples of 128 for tiny graphs, 512 otherwise, so that large
    # divisor tiles always exist (no tile collapse for awkward N).
    n128 = _round_up(N, 128)
    np_ = n128 if n128 < 512 else _round_up(N, 512)

    tm = _pick_tile(np_, 512)     # dst-row tile (also pass-1 row tile)
    tk = _pick_tile(np_, 2048)    # src-col (reduction) tile
    # v7x has 2 TensorCores; keep >= 2 "parallel" dst tiles when the split stays 128-aligned.
    if np_ // tm < 2 and tm % 256 == 0:
        tm //= 2

    feats_p = jnp.zeros((np_, dip), f32).at[:N, :in_dim].set(feats.astype(f32))
    adj_p = jnp.zeros((np_, np_), bf16).at[:N, :N].set(adj.astype(bf16))
    wf_p = jnp.zeros((dip, dp), f32).at[:in_dim, :out_dim].set(w_f.astype(f32))
    bf_p = jnp.zeros((1, dp), f32).at[:, :out_dim].set(b_f.astype(f32))
    wp_p = jnp.zeros((dp, dp), f32).at[:out_dim, :out_dim].set(w_phy.astype(f32))
    bp_p = jnp.zeros((1, dp), f32).at[:, :out_dim].set(b_phy.astype(f32))
    eps_s = jnp.asarray(eps, f32).reshape((1,))

    vmem_cap = 32 * 1024 * 1024   # explicit bump for v5e (16 MiB default); safe on v7x

    # ---- pass 1: h = relu(feats @ W_f + b_f), tiled over node rows ----
    h_f32, h_bf16 = pl.pallas_call(
        mlp_f_kernel,
        out_shape=(jax.ShapeDtypeStruct((np_, dp), f32),
                   jax.ShapeDtypeStruct((np_, dp), bf16)),
        grid_spec=pltpu.PrefetchScalarGridSpec(
            num_scalar_prefetch=0,
            grid=(np_ // tm,),
            in_specs=[
                pl.BlockSpec((tm, dip), lambda i: (i, 0)),
                pl.BlockSpec((dip, dp), lambda i: (0, 0)),
                pl.BlockSpec((1, dp), lambda i: (0, 0)),
            ],
            out_specs=[pl.BlockSpec((tm, dp), lambda i: (i, 0)),
                       pl.BlockSpec((tm, dp), lambda i: (i, 0))],
        ),
        compiler_params=pltpu.CompilerParams(
            dimension_semantics=("parallel",),
            vmem_limit_bytes=vmem_cap),
    )(feats_p, wf_p, bf_p)

    # ---- pass 2: n = adj @ h (bf16 K-reduction), combine, second MLP ----
    out_p = pl.pallas_call(
        gin_agg_kernel,
        out_shape=jax.ShapeDtypeStruct((np_, dp), f32),
        grid_spec=pltpu.PrefetchScalarGridSpec(
            num_scalar_prefetch=1,                                  # eps -> SMEM
            grid=(np_ // tm, np_ // tk),
            in_specs=[
                pl.BlockSpec((tm, tk), lambda i, k, eps: (i, k)),   # adj tile (bf16)
                pl.BlockSpec((tk, dp), lambda i, k, eps: (k, 0)),   # h src rows (bf16)
                pl.BlockSpec((tm, dp), lambda i, k, eps: (i, 0)),   # h dst rows (f32)
                pl.BlockSpec((dp, dp), lambda i, k, eps: (0, 0)),   # W_phy
                pl.BlockSpec((1, dp), lambda i, k, eps: (0, 0)),    # b_phy
            ],
            out_specs=pl.BlockSpec((tm, dp), lambda i, k, eps: (i, 0)),
            scratch_shapes=[pltpu.VMEM((tm, dp), jnp.float32)],
        ),
        compiler_params=pltpu.CompilerParams(
            dimension_semantics=("parallel", "arbitrary"),
            vmem_limit_bytes=vmem_cap),
    )(eps_s, adj_p, h_bf16, h_f32, wp_p, bp_p)

    return out_p[:N, :out_dim]


def gin_reference_f32(eps, adj, feats, w_f, b_f, w_phy, b_phy):
    """Pure f32 reference (the module's literal expression: 1 + eps*h + n)."""
    h = jax.nn.relu(feats @ w_f + b_f)
    n = adj @ h
    h2 = 1.0 + eps[0, 0] * h + n
    return jax.nn.relu(h2 @ w_phy + b_phy)


def gin_reference_mixed(eps, adj, feats, w_f, b_f, w_phy, b_phy):
    """Reference that mirrors the kernel's numerics (bf16 aggregation, f32 accum)."""
    h = jax.nn.relu(feats @ w_f + b_f)
    n = jnp.dot(adj.astype(jnp.bfloat16), h.astype(jnp.bfloat16),
                preferred_element_type=jnp.float32)
    h2 = 1.0 + eps[0, 0] * h + n
    return jax.nn.relu(h2 @ w_phy + b_phy)


if __name__ == "__main__":
    key = jax.random.PRNGKey(0)
    N, in_dim, out_dim = 16, 32, 32

    k_feat, k_adj, k_wf, k_bf, k_wp, k_bp = jax.random.split(key, 6)

    # Deterministic synthetic parameters (PyTorch nn.Linear-style scaling).
    feats = jax.random.normal(k_feat, (N, in_dim), dtype=jnp.float32)
    # Random directed graph as a dense adjacency: adj[dst, src] in {0,1}.
    adj = (jax.random.uniform(k_adj, (N, N)) < 0.25).astype(jnp.float32)

    sf = 1.0 / jnp.sqrt(in_dim)
    sp = 1.0 / jnp.sqrt(out_dim)
    w_f = jax.random.uniform(k_wf, (in_dim, out_dim), minval=-sf, maxval=sf).astype(jnp.float32)
    b_f = jax.random.uniform(k_bf, (1, out_dim), minval=-sf, maxval=sf).astype(jnp.float32)
    w_phy = jax.random.uniform(k_wp, (out_dim, out_dim), minval=-sp, maxval=sp).astype(jnp.float32)
    b_phy = jax.random.uniform(k_bp, (1, out_dim), minval=-sp, maxval=sp).astype(jnp.float32)

    eps = jnp.zeros((1, 1), dtype=jnp.float32)  # init_eps = 0

    gin_fn = jax.jit(gin_forward)
    out = gin_fn(eps, adj, feats, w_f, b_f, w_phy, b_phy)
    out = jax.block_until_ready(out)

    ref_mixed = gin_reference_mixed(eps, adj, feats, w_f, b_f, w_phy, b_phy)
    ref_f32 = gin_reference_f32(eps, adj, feats, w_f, b_f, w_phy, b_phy)

    assert out.shape == (N, out_dim)
    # Tight check against a reference with matching (bf16-aggregation) numerics.
    assert jnp.allclose(out, ref_mixed, atol=1e-2, rtol=1e-2), "mismatch vs mixed-precision ref"
    # Loose check against the pure-f32 reference (bf16 rounding of h enters adj@h only).
    assert jnp.allclose(out, ref_f32, atol=5e-2, rtol=5e-2), "mismatch vs f32 reference"

    print("KERNEL_OK")
</pallas_src>

<mosaic_0001>
module attributes {stable_mosaic.version = 11 : i64} {
  func.func @mlp_f_kernel(%arg0: i32, %arg1: memref<128x128xf32, #tpu.memory_space<vmem>>, %arg2: memref<128x128xf32, #tpu.memory_space<vmem>>, %arg3: memref<1x128xf32, #tpu.memory_space<vmem>>, %arg4: memref<128x128xf32, #tpu.memory_space<vmem>>, %arg5: memref<128x128xbf16, #tpu.memory_space<vmem>>) attributes {dimension_semantics = [#tpu.dimension_semantics<parallel>], iteration_bounds = array<i64: 1>, scalar_prefetch = 0 : i64, scratch_operands = 0 : i64, tpu.core_type = #tpu.core_type<tc>, window_params = [{transform_indices = @transform_0, window_bounds = array<i64: 128, 128>}, {pipeline_mode = #tpu.pipeline_mode<synchronous>, transform_indices = @transform_1, window_bounds = array<i64: 128, 128>}, {pipeline_mode = #tpu.pipeline_mode<synchronous>, transform_indices = @transform_2, window_bounds = array<i64: 1, 128>}, {transform_indices = @transform_3, window_bounds = array<i64: 128, 128>}, {transform_indices = @transform_4, window_bounds = array<i64: 128, 128>}]} {
    %c0 = arith.constant 0 : index
    %c0_0 = arith.constant 0 : index
    %0 = vector.load %arg1[%c0, %c0_0] : memref<128x128xf32, #tpu.memory_space<vmem>>, vector<128x128xf32>
    %c0_1 = arith.constant 0 : index
    %c0_2 = arith.constant 0 : index
    %1 = vector.load %arg2[%c0_1, %c0_2] : memref<128x128xf32, #tpu.memory_space<vmem>>, vector<128x128xf32>
    %cst = arith.constant dense<0.000000e+00> : vector<128x128xf32>
    %2 = tpu.matmul %0, %1, %cst {dimension_numbers = #tpu.dot_dimension_numbers<[1], [0], [0], [1], [0, 0, 1, 1], [], []>} : vector<128x128xf32>, vector<128x128xf32>, vector<128x128xf32> -> vector<128x128xf32>
    %c0_3 = arith.constant 0 : index
    %c0_4 = arith.constant 0 : index
    %3 = vector.load %arg3[%c0_3, %c0_4] : memref<1x128xf32, #tpu.memory_space<vmem>>, vector<1x128xf32>
    %4 = vector.broadcast %3 : vector<1x128xf32> to vector<128x128xf32>
    %5 = arith.addf %2, %4 : vector<128x128xf32>
    %cst_5 = arith.constant 0.000000e+00 : f32
    %6 = vector.broadcast %cst_5 : f32 to vector<128x128xf32>
    %7 = arith.maximumf %5, %6 : vector<128x128xf32>
    %c0_6 = arith.constant 0 : index
    %c0_7 = arith.constant 0 : index
    %8 = vector.load %arg4[%c0_6, %c0_7] : memref<128x128xf32, #tpu.memory_space<vmem>>, vector<128x128xf32>
    tpu.vector_store %arg4[%c0_6, %c0_7], %7 {strides = array<i32>} : memref<128x128xf32, #tpu.memory_space<vmem>>, vector<128x128xf32>,
    %9 = arith.truncf %7 : vector<128x128xf32> to vector<128x128xbf16>
    %c0_8 = arith.constant 0 : index
    %c0_9 = arith.constant 0 : index
    %10 = vector.load %arg5[%c0_8, %c0_9] : memref<128x128xbf16, #tpu.memory_space<vmem>>, vector<128x128xbf16>
    tpu.vector_store %arg5[%c0_8, %c0_9], %9 {strides = array<i32>} : memref<128x128xbf16, #tpu.memory_space<vmem>>, vector<128x128xbf16>,
    return
  }
  func.func @transform_0(%arg0: i32) -> (i32, i32) {
    %c0_i32 = arith.constant 0 : i32
    %c0_i32_0 = arith.constant 0 : i32
    return %arg0, %c0_i32 : i32, i32
  }
  func.func @transform_1(%arg0: i32) -> (i32, i32) {
    %c0_i32 = arith.constant 0 : i32
    %c0_i32_0 = arith.constant 0 : i32
    %c0_i32_1 = arith.constant 0 : i32
    return %c0_i32, %c0_i32_0 : i32, i32
  }
  func.func @transform_2(%arg0: i32) -> (i32, i32) {
    %c0_i32 = arith.constant 0 : i32
    %c0_i32_0 = arith.constant 0 : i32
    %c0_i32_1 = arith.constant 0 : i32
    return %c0_i32, %c0_i32_0 : i32, i32
  }
  func.func @transform_3(%arg0: i32) -> (i32, i32) {
    %c0_i32 = arith.constant 0 : i32
    %c0_i32_0 = arith.constant 0 : i32
    return %arg0, %c0_i32 : i32, i32
  }
  func.func @transform_4(%arg0: i32) -> (i32, i32) {
    %c0_i32 = arith.constant 0 : i32
    %c0_i32_0 = arith.constant 0 : i32
    return %arg0, %c0_i32 : i32, i32
  }
}

module attributes {stable_mosaic.version = 11 : i64} {
  func.func @gin_agg_kernel(%arg0: i32, %arg1: i32, %arg2: memref<1xf32, #tpu.memory_space<smem>>, %arg3: memref<128x128xbf16, #tpu.memory_space<vmem>>, %arg4: memref<128x128xbf16, #tpu.memory_space<vmem>>, %arg5: memref<128x128xf32, #tpu.memory_space<vmem>>, %arg6: memref<128x128xf32, #tpu.memory_space<vmem>>, %arg7: memref<1x128xf32, #tpu.memory_space<vmem>>, %arg8: memref<128x128xf32, #tpu.memory_space<vmem>>, %arg9: memref<128x128xf32, #tpu.memory_space<vmem>>) attributes {dimension_semantics = [#tpu.dimension_semantics<parallel>, #tpu.dimension_semantics<arbitrary>], iteration_bounds = array<i64: 1, 1>, scalar_prefetch = 1 : i64, scratch_operands = 1 : i64, tpu.core_type = #tpu.core_type<tc>, window_params = [{transform_indices = @transform_0, window_bounds = array<i64: 128, 128>}, {transform_indices = @transform_1, window_bounds = array<i64: 128, 128>}, {transform_indices = @transform_2, window_bounds = array<i64: 128, 128>}, {pipeline_mode = #tpu.pipeline_mode<synchronous>, transform_indices = @transform_3, window_bounds = array<i64: 128, 128>}, {pipeline_mode = #tpu.pipeline_mode<synchronous>, transform_indices = @transform_4, window_bounds = array<i64: 1, 128>}, {transform_indices = @transform_5, window_bounds = array<i64: 128, 128>}]} {
    %c0_i32 = arith.constant 0 : i32
    %0 = arith.cmpi eq, %arg1, %c0_i32 : i32
    %1 = arith.extui %0 : i1 to i32
    %c0_i32_0 = arith.constant 0 : i32
    %2 = arith.cmpi ne, %1, %c0_i32_0 : i32
    scf.if %2 {
      %cst_10 = arith.constant 0.000000e+00 : f32
      %12 = vector.broadcast %cst_10 : f32 to vector<128x128xf32>
      %c0_11 = arith.constant 0 : index
      %c0_12 = arith.constant 0 : index
      %13 = vector.load %arg9[%c0_11, %c0_12] : memref<128x128xf32, #tpu.memory_space<vmem>>, vector<128x128xf32>
      tpu.vector_store %arg9[%c0_11, %c0_12], %12 {strides = array<i32>} : memref<128x128xf32, #tpu.memory_space<vmem>>, vector<128x128xf32>,
    } else {
    }
    %c0 = arith.constant 0 : index
    %c0_1 = arith.constant 0 : index
    %3 = vector.load %arg9[%c0, %c0_1] : memref<128x128xf32, #tpu.memory_space<vmem>>, vector<128x128xf32>
    %c0_2 = arith.constant 0 : index
    %c0_3 = arith.constant 0 : index
    %4 = vector.load %arg3[%c0_2, %c0_3] : memref<128x128xbf16, #tpu.memory_space<vmem>>, vector<128x128xbf16>
    %c0_4 = arith.constant 0 : index
    %c0_5 = arith.constant 0 : index
    %5 = vector.load %arg4[%c0_4, %c0_5] : memref<128x128xbf16, #tpu.memory_space<vmem>>, vector<128x128xbf16>
    %cst = arith.constant dense<0.000000e+00> : vector<128x128xf32>
    %6 = tpu.matmul %4, %5, %cst {dimension_numbers = #tpu.dot_dimension_numbers<[1], [0], [0], [1], [0, 0, 1, 1], [], []>} : vector<128x128xbf16>, vector<128x128xbf16>, vector<128x128xf32> -> vector<128x128xf32>
    %7 = arith.addf %3, %6 : vector<128x128xf32>
    %c0_6 = arith.constant 0 : index
    %c0_7 = arith.constant 0 : index
    %8 = vector.load %arg9[%c0_6, %c0_7] : memref<128x128xf32, #tpu.memory_space<vmem>>, vector<128x128xf32>
    tpu.vector_store %arg9[%c0_6, %c0_7], %7 {strides = array<i32>} : memref<128x128xf32, #tpu.memory_space<vmem>>, vector<128x128xf32>,
    %c0_i32_8 = arith.constant 0 : i32
    %9 = arith.cmpi eq, %arg1, %c0_i32_8 : i32
    %10 = arith.extui %9 : i1 to i32
    %c0_i32_9 = arith.constant 0 : i32
    %11 = arith.cmpi ne, %10, %c0_i32_9 : i32
    scf.if %11 {
      %c0_10 = arith.constant 0 : index
      %12 = memref.load %arg2[%c0_10] : memref<1xf32, #tpu.memory_space<smem>>
      %c0_11 = arith.constant 0 : index
      %c0_12 = arith.constant 0 : index
      %13 = vector.load %arg5[%c0_11, %c0_12] : memref<128x128xf32, #tpu.memory_space<vmem>>, vector<128x128xf32>
      %14 = vector.broadcast %12 : f32 to vector<128x128xf32>
      %15 = arith.mulf %14, %13 : vector<128x128xf32>
      %cst_13 = arith.constant 1.000000e+00 : f32
      %16 = vector.broadcast %cst_13 : f32 to vector<128x128xf32>
      %17 = arith.addf %16, %15 : vector<128x128xf32>
      %c0_14 = arith.constant 0 : index
      %c0_15 = arith.constant 0 : index
      %18 = vector.load %arg9[%c0_14, %c0_15] : memref<128x128xf32, #tpu.memory_space<vmem>>, vector<128x128xf32>
      %19 = arith.addf %17, %18 : vector<128x128xf32>
      %c0_16 = arith.constant 0 : index
      %c0_17 = arith.constant 0 : index
      %20 = vector.load %arg6[%c0_16, %c0_17] : memref<128x128xf32, #tpu.memory_space<vmem>>, vector<128x128xf32>
      %cst_18 = arith.constant dense<0.000000e+00> : vector<128x128xf32>
      %21 = tpu.matmul %19, %20, %cst_18 {dimension_numbers = #tpu.dot_dimension_numbers<[1], [0], [0], [1], [0, 0, 1, 1], [], []>} : vector<128x128xf32>, vector<128x128xf32>, vector<128x128xf32> -> vector<128x128xf32>
      %c0_19 = arith.constant 0 : index
      %c0_20 = arith.constant 0 : index
      %22 = vector.load %arg7[%c0_19, %c0_20] : memref<1x128xf32, #tpu.memory_space<vmem>>, vector<1x128xf32>
      %23 = vector.broadcast %22 : vector<1x128xf32> to vector<128x128xf32>
      %24 = arith.addf %21, %23 : vector<128x128xf32>
      %cst_21 = arith.constant 0.000000e+00 : f32
      %25 = vector.broadcast %cst_21 : f32 to vector<128x128xf32>
      %26 = arith.maximumf %24, %25 : vector<128x128xf32>
      %c0_22 = arith.constant 0 : index
      %c0_23 = arith.constant 0 : index
      %27 = vector.load %arg8[%c0_22, %c0_23] : memref<128x128xf32, #tpu.memory_space<vmem>>, vector<128x128xf32>
      tpu.vector_store %arg8[%c0_22, %c0_23], %26 {strides = array<i32>} : memref<128x128xf32, #tpu.memory_space<vmem>>, vector<128x128xf32>,
    } else {
    }
    return
  }
  func.func @transform_0(%arg0: i32, %arg1: i32, %arg2: memref<1xf32, #tpu.memory_space<smem>>) -> (i32, i32) {
    %c0_i32 = arith.constant 0 : i32
    return %arg0, %arg1 : i32, i32
  }
  func.func @transform_1(%arg0: i32, %arg1: i32, %arg2: memref<1xf32, #tpu.memory_space<smem>>) -> (i32, i32) {
    %c0_i32 = arith.constant 0 : i32
    %c0_i32_0 = arith.constant 0 : i32
    return %arg1, %c0_i32 : i32, i32
  }
  func.func @transform_2(%arg0: i32, %arg1: i32, %arg2: memref<1xf32, #tpu.memory_space<smem>>) -> (i32, i32) {
    %c0_i32 = arith.constant 0 : i32
    %c0_i32_0 = arith.constant 0 : i32
    return %arg0, %c0_i32 : i32, i32
  }
  func.func @transform_3(%arg0: i32, %arg1: i32, %arg2: memref<1xf32, #tpu.memory_space<smem>>) -> (i32, i32) {
    %c0_i32 = arith.constant 0 : i32
    %c0_i32_0 = arith.constant 0 : i32
    %c0_i32_1 = arith.constant 0 : i32
    return %c0_i32, %c0_i32_0 : i32, i32
  }
  func.func @transform_4(%arg0: i32, %arg1: i32, %arg2: memref<1xf32, #tpu.memory_space<smem>>) -> (i32, i32) {
    %c0_i32 = arith.constant 0 : i32
    %c0_i32_0 = arith.constant 0 : i32
    %c0_i32_1 = arith.constant 0 : i32
    return %c0_i32, %c0_i32_0 : i32, i32
  }
  func.func @transform_5(%arg0: i32, %arg1: i32, %arg2: memref<1xf32, #tpu.memory_space<smem>>) -> (i32, i32) {
    %c0_i32 = arith.constant 0 : i32
    %c0_i32_0 = arith.constant 0 : i32
    return %arg0, %c0_i32 : i32, i32
  }
}

</mosaic_0001>

<llo_original>
// kernel: gin_forward.2
$region0: #{gin_forward.2}
  #allocation0 [shape = 'u32[]', space=smem, size = 0x4, offset = 0x4, fixed_abs, tag = 'smem constant byte address 0x4 - core index']
  #allocation1 [shape = 'u32[144,128]{1,0:T(1,128)}', space=vmem, size = 0x12000, scoped, tag = 'internal scratch']
  %s0 = inlined_call_operand.vmem [shape: f32[128,128], index: 0, kind: input, shape index: {}]
  %s1 = inlined_call_operand.vmem [shape: f32[128,128], index: 1, kind: input, shape index: {}]
  %s2 = inlined_call_operand.vmem [shape: f32[1,128], index: 2, kind: input, shape index: {}]
  %s3 = inlined_call_operand.vmem [shape: f32[128,128], index: 3, kind: output, shape index: {0}]
  %s4 = inlined_call_operand.vmem [shape: bf16[128,128], index: 4, kind: output, shape index: {1}]
  %5 = xla_tuple %s3, %s4
  %s6 = sld [smem:[#allocation0]]
  $region30: #{gin_forward.2} parent=0
    _
  %s8 = ssub.s32 1, %s6
  %s9 = scalar_select 0, %s8, %s6
  // Predicated region
  $region2: #{gin_forward.2} parent=0 // pred_check
    _
  $region3: #{gin_forward.2} parent=0 // pred_check_branch
    %11 = sbr.rel (0) target = $region5
  $region4: #{gin_forward.2} parent=0 // pred_region
    _
  $region5: #{gin_forward.2} parent=0 // pred_fallthru
    _
  // Predicated region
  $region6: #{gin_forward.2} parent=0 // pred_check
    _
  $region7: #{gin_forward.2} parent=0 // pred_check_branch
    %13 = sbr.rel (0) target = $region9
  $region8: #{gin_forward.2} parent=0 // pred_region
    _
  $region9: #{gin_forward.2} parent=0 // pred_fallthru
    _
  // Predicated region
  $region10: #{gin_forward.2} parent=0 // pred_check
    _
  $region11: #{gin_forward.2} parent=0 // pred_check_branch
    %15 = sbr.rel (0) target = $region13
  $region12: #{gin_forward.2} parent=0 // pred_region
    _
  $region13: #{gin_forward.2} parent=0 // pred_fallthru
    _
  %v16 = vld [vmem:[%s0] sm:$0xff]
  %v17 = vld [vmem:[%s0 + $0x8] sm:$0xff]
  %v18 = vld [vmem:[%s0 + $0x10] sm:$0xff]
  %v19 = vld [vmem:[%s0 + $0x18] sm:$0xff]
  %v20 = vld [vmem:[%s0 + $0x20] sm:$0xff]
  %v21 = vld [vmem:[%s0 + $0x28] sm:$0xff]
  %v22 = vld [vmem:[%s0 + $0x30] sm:$0xff]
  %v23 = vld [vmem:[%s0 + $0x38] sm:$0xff]
  %v24 = vld [vmem:[%s0 + $0x40] sm:$0xff]
  %v25 = vld [vmem:[%s0 + $0x48] sm:$0xff]
  %v26 = vld [vmem:[%s0 + $0x50] sm:$0xff]
  %v27 = vld [vmem:[%s0 + $0x58] sm:$0xff]
  %v28 = vld [vmem:[%s0 + $0x60] sm:$0xff]
  %v29 = vld [vmem:[%s0 + $0x68] sm:$0xff]
  %v30 = vld [vmem:[%s0 + $0x70] sm:$0xff]
  %v31 = vld [vmem:[%s0 + $0x78] sm:$0xff]
  %v32 = vld [vmem:[%s1] sm:$0xff]
  %v33 = vld [vmem:[%s1 + $0x8] sm:$0xff]
  %v34 = vld [vmem:[%s1 + $0x10] sm:$0xff]
  %v35 = vld [vmem:[%s1 + $0x18] sm:$0xff]
  %v36 = vld [vmem:[%s1 + $0x20] sm:$0xff]
  %v37 = vld [vmem:[%s1 + $0x28] sm:$0xff]
  %v38 = vld [vmem:[%s1 + $0x30] sm:$0xff]
  %v39 = vld [vmem:[%s1 + $0x38] sm:$0xff]
  %v40 = vld [vmem:[%s1 + $0x40] sm:$0xff]
  %v41 = vld [vmem:[%s1 + $0x48] sm:$0xff]
  %v42 = vld [vmem:[%s1 + $0x50] sm:$0xff]
  %v43 = vld [vmem:[%s1 + $0x58] sm:$0xff]
  %v44 = vld [vmem:[%s1 + $0x60] sm:$0xff]
  %v45 = vld [vmem:[%s1 + $0x68] sm:$0xff]
  %v46 = vld [vmem:[%s1 + $0x70] sm:$0xff]
  %v47 = vld [vmem:[%s1 + $0x78] sm:$0xff]
  %v48 = vld [vmem:[%s2] sm:$0x1]
  %v50 = vlaneseq
  %v51 = vshrl.u32 %v50, 7
  %v52 = vsub.s32 0, %v51
  %v53 = vrot.slane %v48, %v52
  %55 = vmatprep.subr.mxu0 0.0
  %56 = vmatpush1.msra.mxu0 %v32
  %57 = vmatprep.subr.mxu0 0.0
  %58 = vmatpush1.msra.mxu0 %v33
  %59 = vmatprep.subr.mxu0 0.0
  %60 = vmatpush1.msra.mxu0 %v34
  %61 = vmatprep.subr.mxu0 0.0
  %62 = vmatpush1.msra.mxu0 %v35
  %63 = vmatprep.subr.mxu0 0.0
  %64 = vmatpush1.msra.mxu0 %v36
  %65 = vmatprep.subr.mxu0 0.0
  %66 = vmatpush1.msra.mxu0 %v37
  %67 = vmatprep.subr.mxu0 0.0
  %68 = vmatpush1.msra.mxu0 %v38
  %69 = vmatprep.subr.mxu0 0.0
  %70 = vmatpush1.msra.mxu0 %v39
  %71 = vmatprep.subr.mxu0 0.0
  %72 = vmatpush1.msra.mxu0 %v40
  %73 = vmatprep.subr.mxu0 0.0
  %74 = vmatpush1.msra.mxu0 %v41
  %75 = vmatprep.subr.mxu0 0.0
  %76 = vmatpush1.msra.mxu0 %v42
  %77 = vmatprep.subr.mxu0 0.0
  %78 = vmatpush1.msra.mxu0 %v43
  %79 = vmatprep.subr.mxu0 0.0
  %80 = vmatpush1.msra.mxu0 %v44
  %81 = vmatprep.subr.mxu0 0.0
  %82 = vmatpush1.msra.mxu0 %v45
  %83 = vmatprep.subr.mxu0 0.0
  %84 = vmatpush1.msra.mxu0 %v46
  %85 = vmatprep.subr.mxu0 0.0
  %86 = vmatpush1.msra.mxu0 %v47
  %87 = vmatprep.subr.mxu0 0.0
  %88 = vmatpush1.msra.mxu0 0.0
  %89 = vmatprep.subr.mxu0 0.0
  %90 = vmatpush1.msra.mxu0 0.0
  %91 = vmatprep.subr.mxu0 0.0
  %92 = vmatpush1.msra.mxu0 0.0
  %93 = vmatprep.subr.mxu0 0.0
  %94 = vmatpush1.msra.mxu0 0.0
  %95 = vmatprep.subr.mxu0 0.0
  %96 = vmatpush1.msra.mxu0 0.0
  %97 = vmatprep.subr.mxu0 0.0
  %98 = vmatpush1.msra.mxu0 0.0
  %99 = vmatprep.subr.mxu0 0.0
  %100 = vmatpush1.msra.mxu0 0.0
  %101 = vmatprep.subr.mxu0 0.0
  %102 = vmatpush1.msra.mxu0 0.0
  %103 = vmatprep.subr.mxu0 0.0
  %104 = vmatpush1.msra.mxu0 0.0
  %105 = vmatprep.subr.mxu0 0.0
  %106 = vmatpush1.msra.mxu0 0.0
  %107 = vmatprep.subr.mxu0 0.0
  %108 = vmatpush1.msra.mxu0 0.0
  %109 = vmatprep.subr.mxu0 0.0
  %110 = vmatpush1.msra.mxu0 0.0
  %111 = vmatprep.subr.mxu0 0.0
  %112 = vmatpush1.msra.mxu0 0.0
  %113 = vmatprep.subr.mxu0 0.0
  %114 = vmatpush1.msra.mxu0 0.0
  %115 = vmatprep.subr.mxu0 0.0
  %116 = vmatpush1.msra.mxu0 0.0
  %117 = vmatprep.subr.mxu0 0.0
  %118 = vmatpush1.msra.mxu0 0.0
  %119 = vmatprep.mubr.f32.mxu0 0.0
  %120 = vmatmul.mubr.f32.gmra.mrb[0].mxu0 %v16
  %v121 = vpop.f32.mrb[0].mxu0
  %v122 = vadd.f32 %v53, %v121
  %v123 = vpop.f32.mrb[0].mxu0
  %124 = vmatprep.mubr.f32.mxu0 0.0
  %125 = vmatmul.mubr.f32.gmra.mrb[0].mxu0 %v17
  %v126 = vpop.f32.mrb[0].mxu0
  %v127 = vadd.f32 %v53, %v126
  %v128 = vpop.f32.mrb[0].mxu0
  %129 = vmatprep.mubr.f32.mxu0 0.0
  %130 = vmatmul.mubr.f32.gmra.mrb[0].mxu0 %v18
  %v131 = vpop.f32.mrb[0].mxu0
  %v132 = vadd.f32 %v53, %v131
  %v133 = vpop.f32.mrb[0].mxu0
  %134 = vmatprep.mubr.f32.mxu0 0.0
  %135 = vmatmul.mubr.f32.gmra.mrb[0].mxu0 %v19
  %v136 = vpop.f32.mrb[0].mxu0
  %v137 = vadd.f32 %v53, %v136
  %v138 = vpop.f32.mrb[0].mxu0
  %139 = vmatprep.mubr.f32.mxu0 0.0
  %140 = vmatmul.mubr.f32.gmra.mrb[0].mxu0 %v20
  %v141 = vpop.f32.mrb[0].mxu0
  %v142 = vadd.f32 %v53, %v141
  %v143 = vpop.f32.mrb[0].mxu0
  %144 = vmatprep.mubr.f32.mxu0 0.0
  %145 = vmatmul.mubr.f32.gmra.mrb[0].mxu0 %v21
  %v146 = vpop.f32.mrb[0].mxu0
  %v147 = vadd.f32 %v53, %v146
  %v148 = vpop.f32.mrb[0].mxu0
  %149 = vmatprep.mubr.f32.mxu0 0.0
  %150 = vmatmul.mubr.f32.gmra.mrb[0].mxu0 %v22
  %v151 = vpop.f32.mrb[0].mxu0
  %v152 = vadd.f32 %v53, %v151
  %v153 = vpop.f32.mrb[0].mxu0
  %154 = vmatprep.mubr.f32.mxu0 0.0
  %155 = vmatmul.mubr.f32.gmra.mrb[0].mxu0 %v23
  %v156 = vpop.f32.mrb[0].mxu0
  %v157 = vadd.f32 %v53, %v156
  %v158 = vpop.f32.mrb[0].mxu0
  %159 = vmatprep.mubr.f32.mxu0 0.0
  %160 = vmatmul.mubr.f32.gmra.mrb[0].mxu0 %v24
  %v161 = vpop.f32.mrb[0].mxu0
  %v162 = vadd.f32 %v53, %v161
  %v163 = vpop.f32.mrb[0].mxu0
  %164 = vmatprep.mubr.f32.mxu0 0.0
  %165 = vmatmul.mubr.f32.gmra.mrb[0].mxu0 %v25
  %v166 = vpop.f32.mrb[0].mxu0
  %v167 = vadd.f32 %v53, %v166
  %v168 = vpop.f32.mrb[0].mxu0
  %169 = vmatprep.mubr.f32.mxu0 0.0
  %170 = vmatmul.mubr.f32.gmra.mrb[0].mxu0 %v26
  %v171 = vpop.f32.mrb[0].mxu0
  %v172 = vadd.f32 %v53, %v171
  %v173 = vpop.f32.mrb[0].mxu0
  %174 = vmatprep.mubr.f32.mxu0 0.0
  %175 = vmatmul.mubr.f32.gmra.mrb[0].mxu0 %v27
  %v176 = vpop.f32.mrb[0].mxu0
  %v177 = vadd.f32 %v53, %v176
  %v178 = vpop.f32.mrb[0].mxu0
  %179 = vmatprep.mubr.f32.mxu0 0.0
  %180 = vmatmul.mubr.f32.gmra.mrb[0].mxu0 %v28
  %v181 = vpop.f32.mrb[0].mxu0
  %v182 = vadd.f32 %v53, %v181
  %v183 = vpop.f32.mrb[0].mxu0
  %184 = vmatprep.mubr.f32.mxu0 0.0
  %185 = vmatmul.mubr.f32.gmra.mrb[0].mxu0 %v29
  %v186 = vpop.f32.mrb[0].mxu0
  %v187 = vadd.f32 %v53, %v186
  %v188 = vpop.f32.mrb[0].mxu0
  %189 = vmatprep.mubr.f32.mxu0 0.0
  %190 = vmatmul.mubr.f32.gmra.mrb[0].mxu0 %v30
  %v191 = vpop.f32.mrb[0].mxu0
  %v192 = vadd.f32 %v53, %v191
  %v193 = vpop.f32.mrb[0].mxu0
  %194 = vmatprep.mubr.f32.mxu0 0.0
  %195 = vmatmul.mubr.f32.gmra.mrb[0].mxu0 %v31
  %v196 = vpop.f32.mrb[0].mxu0
  %v197 = vadd.f32 %v53, %v196
  %v198 = vpop.f32.mrb[0].mxu0
  %199 = vdwg.mxu0
  %v200 = vmax.f32 %v122, 0.0
  %v201 = vmax.f32 %v127, 0.0
  %v202 = vmax.f32 %v132, 0.0
  %v203 = vmax.f32 %v137, 0.0
  %v204 = vmax.f32 %v142, 0.0
  %v205 = vmax.f32 %v147, 0.0
  %v206 = vmax.f32 %v152, 0.0
  %v207 = vmax.f32 %v157, 0.0
  %v208 = vmax.f32 %v162, 0.0
  %v209 = vmax.f32 %v167, 0.0
  %v210 = vmax.f32 %v172, 0.0
  %v211 = vmax.f32 %v177, 0.0
  %v212 = vmax.f32 %v182, 0.0
  %v213 = vmax.f32 %v187, 0.0
  %v214 = vmax.f32 %v192, 0.0
  %v215 = vmax.f32 %v197, 0.0
  %216 = vst [vmem:[%s3] sm:$0xff] %v200
  %217 = vst [vmem:[%s3 + $0x8] sm:$0xff] %v201
  %218 = vst [vmem:[%s3 + $0x10] sm:$0xff] %v202
  %219 = vst [vmem:[%s3 + $0x18] sm:$0xff] %v203
  %220 = vst [vmem:[%s3 + $0x20] sm:$0xff] %v204
  %221 = vst [vmem:[%s3 + $0x28] sm:$0xff] %v205
  %222 = vst [vmem:[%s3 + $0x30] sm:$0xff] %v206
  %223 = vst [vmem:[%s3 + $0x38] sm:$0xff] %v207
  %224 = vst [vmem:[%s3 + $0x40] sm:$0xff] %v208
  %225 = vst [vmem:[%s3 + $0x48] sm:$0xff] %v209
  %226 = vst [vmem:[%s3 + $0x50] sm:$0xff] %v210
  %227 = vst [vmem:[%s3 + $0x58] sm:$0xff] %v211
  %228 = vst [vmem:[%s3 + $0x60] sm:$0xff] %v212
  %229 = vst [vmem:[%s3 + $0x68] sm:$0xff] %v213
  %230 = vst [vmem:[%s3 + $0x70] sm:$0xff] %v214
  %231 = vst [vmem:[%s3 + $0x78] sm:$0xff] %v215
  %v232 = vpack.c.bf16 %v201, %v200
  %v233 = vpack.c.bf16 %v203, %v202
  %v234 = vpack.c.bf16 %v205, %v204
  %v235 = vpack.c.bf16 %v207, %v206
  %v236 = vpack.c.bf16 %v209, %v208
  %v237 = vpack.c.bf16 %v211, %v210
  %v238 = vpack.c.bf16 %v213, %v212
  %v239 = vpack.c.bf16 %v215, %v214
  %v248 = vunpack.c.l.b16 %v232
  %v249 = vunpack.c.h.b16 %v232
  %v250 = vunpack.c.l.b16 %v233
  %v251 = vunpack.c.h.b16 %v233
  %v252 = vunpack.c.l.b16 %v234
  %v253 = vunpack.c.h.b16 %v234
  %v254 = vunpack.c.l.b16 %v235
  %v255 = vunpack.c.h.b16 %v235
  %v256 = vunpack.c.l.b16 %v236
  %v257 = vunpack.c.h.b16 %v236
  %v258 = vunpack.c.l.b16 %v237
  %v259 = vunpack.c.h.b16 %v237
  %v260 = vunpack.c.l.b16 %v238
  %v261 = vunpack.c.h.b16 %v238
  %v262 = vunpack.c.l.b16 %v239
  %v263 = vunpack.c.h.b16 %v239
  %v264 = vpack.c.b16 %v248, %v248
  %v265 = vpack.c.b16 %v249, %v249
  %v266 = vpack.c.b16 %v250, %v250
  %v267 = vpack.c.b16 %v251, %v251
  %v268 = vpack.c.b16 %v252, %v252
  %v269 = vpack.c.b16 %v253, %v253
  %v270 = vpack.c.b16 %v254, %v254
  %v271 = vpack.c.b16 %v255, %v255
  %v272 = vpack.c.b16 %v256, %v256
  %v273 = vpack.c.b16 %v257, %v257
  %v274 = vpack.c.b16 %v258, %v258
  %v275 = vpack.c.b16 %v259, %v259
  %v276 = vpack.c.b16 %v260, %v260
  %v277 = vpack.c.b16 %v261, %v261
  %v278 = vpack.c.b16 %v262, %v262
  %v279 = vpack.c.b16 %v263, %v263
  %296 = vst [vmem:[%s4] sm:$0xf] %v264
  %297 = vst [vmem:[%s4 + $0x4] sm:$0xf] %v265
  %298 = vst [vmem:[%s4 + $0x8] sm:$0xf] %v266
  %299 = vst [vmem:[%s4 + $0xc] sm:$0xf] %v267
  %300 = vst [vmem:[%s4 + $0x10] sm:$0xf] %v268
  %301 = vst [vmem:[%s4 + $0x14] sm:$0xf] %v269
  %302 = vst [vmem:[%s4 + $0x18] sm:$0xf] %v270
  %303 = vst [vmem:[%s4 + $0x1c] sm:$0xf] %v271
  %304 = vst [vmem:[%s4 + $0x20] sm:$0xf] %v272
  %305 = vst [vmem:[%s4 + $0x24] sm:$0xf] %v273
  %306 = vst [vmem:[%s4 + $0x28] sm:$0xf] %v274
  %307 = vst [vmem:[%s4 + $0x2c] sm:$0xf] %v275
  %308 = vst [vmem:[%s4 + $0x30] sm:$0xf] %v276
  %309 = vst [vmem:[%s4 + $0x34] sm:$0xf] %v277
  %310 = vst [vmem:[%s4 + $0x38] sm:$0xf] %v278
  %311 = vst [vmem:[%s4 + $0x3c] sm:$0xf] %v279
  // Predicated region
  $region14: #{gin_forward.2} parent=0 // pred_check
    _
  $region15: #{gin_forward.2} parent=0 // pred_check_branch
    %313 = sbr.rel (0) target = $region17
  $region16: #{gin_forward.2} parent=0 // pred_region
    _
  $region17: #{gin_forward.2} parent=0 // pred_fallthru
    _
  // Predicated region
  $region18: #{gin_forward.2} parent=0 // pred_check
    _
  $region19: #{gin_forward.2} parent=0 // pred_check_branch
    %315 = sbr.rel (0) target = $region21
  $region20: #{gin_forward.2} parent=0 // pred_region
    _
  $region21: #{gin_forward.2} parent=0 // pred_fallthru
    _
  // Predicated region
  $region22: #{gin_forward.2} parent=0 // pred_check
    _
  $region23: #{gin_forward.2} parent=0 // pred_check_branch
    %317 = sbr.rel (0) target = $region25
  $region24: #{gin_forward.2} parent=0 // pred_region
    _
  $region25: #{gin_forward.2} parent=0 // pred_fallthru
    _
  // Predicated region
  $region26: #{gin_forward.2} parent=0 // pred_check
    _
  $region27: #{gin_forward.2} parent=0 // pred_check_branch
    %319 = sbr.rel (0) target = $region29
  $region28: #{gin_forward.2} parent=0 // pred_region
    _
  $region29: #{gin_forward.2} parent=0 // pred_fallthru
    _

// kernel: gin_forward.3
$region0: #{gin_forward.3}
  #allocation0 [shape = 'u32[]', space=smem, size = 0x4, offset = 0x4, fixed_abs, tag = 'smem constant byte address 0x4 - core index']
  #allocation1 [shape = 'u32[144,128]{1,0:T(1,128)}', space=vmem, size = 0x12000, scoped, tag = 'internal scratch']
  #allocation2 [shape = 'f32[128,128]{1,0:T(8,128)}', space=vmem, size = 0x10000, scoped, tag = 'scratch operand']
  #allocation3 [shape = 's32[1]{0}', space=sflag, size = 0x4, scoped, tag = 'scoped memory for gin_forward.3']
  #allocation4 [shape = 'f32[1]{0:T(128)S(6)}', space=smem, size = 0x200, scoped, tag = 'prefetched SMEM operand 0']
  %s0 = inlined_call_operand.<no memory space> [shape: f32[1], index: 0, kind: input, shape index: {}]
  %s1 = inlined_call_operand.vmem [shape: bf16[128,128], index: 1, kind: input, shape index: {}]
  %s2 = inlined_call_operand.vmem [shape: bf16[128,128], index: 2, kind: input, shape index: {}]
  %s3 = inlined_call_operand.vmem [shape: f32[128,128], index: 3, kind: input, shape index: {}]
  %s4 = inlined_call_operand.vmem [shape: f32[128,128], index: 4, kind: input, shape index: {}]
  %s5 = inlined_call_operand.vmem [shape: f32[1,128], index: 5, kind: input, shape index: {}]
  %s6 = inlined_call_operand.vmem [shape: f32[128,128], index: 6, kind: output, shape index: {}]
  %s7 = sld [smem:[#allocation0]]
  $region38: #{gin_forward.3} parent=0
    _
  %s9 = ssub.s32 1, %s7
  %s10 = scalar_select 0, %s9, %s7
  %11 = sst [smem:[#allocation4]] %s0
  // Predicated region
  $region2: #{gin_forward.3} parent=0 // pred_check
    _
  $region3: #{gin_forward.3} parent=0 // pred_check_branch
    %13 = sbr.rel (0) target = $region5
  $region4: #{gin_forward.3} parent=0 // pred_region
    _
  $region5: #{gin_forward.3} parent=0 // pred_fallthru
    _
  // Predicated region
  $region6: #{gin_forward.3} parent=0 // pred_check
    _
  $region7: #{gin_forward.3} parent=0 // pred_check_branch
    %15 = sbr.rel (0) target = $region9
  $region8: #{gin_forward.3} parent=0 // pred_region
    _
  $region9: #{gin_forward.3} parent=0 // pred_fallthru
    _
  // Predicated region
  $region10: #{gin_forward.3} parent=0 // pred_check
    _
  $region11: #{gin_forward.3} parent=0 // pred_check_branch
    %17 = sbr.rel (0) target = $region13
  $region12: #{gin_forward.3} parent=0 // pred_region
    _
  $region13: #{gin_forward.3} parent=0 // pred_fallthru
    _
  // Predicated region
  $region14: #{gin_forward.3} parent=0 // pred_check
    _
  $region15: #{gin_forward.3} parent=0 // pred_check_branch
    %19 = sbr.rel (0) target = $region17
  $region16: #{gin_forward.3} parent=0 // pred_region
    _
  $region17: #{gin_forward.3} parent=0 // pred_fallthru
    _
  // Predicated region
  $region18: #{gin_forward.3} parent=0 // pred_check
    _
  $region19: #{gin_forward.3} parent=0 // pred_check_branch
    %21 = sbr.rel (0) target = $region21
  $region20: #{gin_forward.3} parent=0 // pred_region
    _
  $region21: #{gin_forward.3} parent=0 // pred_fallthru
    _
  %p23 = scmp.eq.s32.totalorder 0, 0
  // Predicated region
  $region22: #{gin_forward.3} parent=0 // pred_check
    %p24 = pneg %p23
  $region23: #{gin_forward.3} parent=0 // pred_check_branch
    %26 = sbr.rel (%p24) target = $region25
  $region24: #{gin_forward.3} parent=0 // pred_region
    %27 = vst [vmem:[#allocation2] sm:$0xff] 0.0
    %28 = vst [vmem:[#allocation2 + $0x8] sm:$0xff] 0.0
    %29 = vst [vmem:[#allocation2 + $0x10] sm:$0xff] 0.0
    %30 = vst [vmem:[#allocation2 + $0x18] sm:$0xff] 0.0
    %31 = vst [vmem:[#allocation2 + $0x20] sm:$0xff] 0.0
    %32 = vst [vmem:[#allocation2 + $0x28] sm:$0xff] 0.0
    %33 = vst [vmem:[#allocation2 + $0x30] sm:$0xff] 0.0
    %34 = vst [vmem:[#allocation2 + $0x38] sm:$0xff] 0.0
    %35 = vst [vmem:[#allocation2 + $0x40] sm:$0xff] 0.0
    %36 = vst [vmem:[#allocation2 + $0x48] sm:$0xff] 0.0
    %37 = vst [vmem:[#allocation2 + $0x50] sm:$0xff] 0.0
    %38 = vst [vmem:[#allocation2 + $0x58] sm:$0xff] 0.0
    %39 = vst [vmem:[#allocation2 + $0x60] sm:$0xff] 0.0
    %40 = vst [vmem:[#allocation2 + $0x68] sm:$0xff] 0.0
    %41 = vst [vmem:[#allocation2 + $0x70] sm:$0xff] 0.0
    %42 = vst [vmem:[#allocation2 + $0x78] sm:$0xff] 0.0
  $region25: #{gin_forward.3} parent=0 // pred_fallthru
    _
  %v43 = vld [vmem:[#allocation2] sm:$0xff]
  %v44 = vld [vmem:[#allocation2 + $0x8] sm:$0xff]
  %v45 = vld [vmem:[#allocation2 + $0x10] sm:$0xff]
  %v46 = vld [vmem:[#allocation2 + $0x18] sm:$0xff]
  %v47 = vld [vmem:[#allocation2 + $0x20] sm:$0xff]
  %v48 = vld [vmem:[#allocation2 + $0x28] sm:$0xff]
  %v49 = vld [vmem:[#allocation2 + $0x30] sm:$0xff]
  %v50 = vld [vmem:[#allocation2 + $0x38] sm:$0xff]
  %v51 = vld [vmem:[#allocation2 + $0x40] sm:$0xff]
  %v52 = vld [vmem:[#allocation2 + $0x48] sm:$0xff]
  %v53 = vld [vmem:[#allocation2 + $0x50] sm:$0xff]
  %v54 = vld [vmem:[#allocation2 + $0x58] sm:$0xff]
  %v55 = vld [vmem:[#allocation2 + $0x60] sm:$0xff]
  %v56 = vld [vmem:[#allocation2 + $0x68] sm:$0xff]
  %v57 = vld [vmem:[#allocation2 + $0x70] sm:$0xff]
  %v58 = vld [vmem:[#allocation2 + $0x78] sm:$0xff]
  %v59 = vld [vmem:[%s1] sm:$0xf]
  %v60 = vld [vmem:[%s1 + $0x4] sm:$0xf]
  %v61 = vld [vmem:[%s1 + $0x8] sm:$0xf]
  %v62 = vld [vmem:[%s1 + $0xc] sm:$0xf]
  %v63 = vld [vmem:[%s1 + $0x10] sm:$0xf]
  %v64 = vld [vmem:[%s1 + $0x14] sm:$0xf]
  %v65 = vld [vmem:[%s1 + $0x18] sm:$0xf]
  %v66 = vld [vmem:[%s1 + $0x1c] sm:$0xf]
  %v67 = vld [vmem:[%s1 + $0x20] sm:$0xf]
  %v68 = vld [vmem:[%s1 + $0x24] sm:$0xf]
  %v69 = vld [vmem:[%s1 + $0x28] sm:$0xf]
  %v70 = vld [vmem:[%s1 + $0x2c] sm:$0xf]
  %v71 = vld [vmem:[%s1 + $0x30] sm:$0xf]
  %v72 = vld [vmem:[%s1 + $0x34] sm:$0xf]
  %v73 = vld [vmem:[%s1 + $0x38] sm:$0xf]
  %v74 = vld [vmem:[%s1 + $0x3c] sm:$0xf]
  %v75 = vld [vmem:[%s2] sm:$0xf]
  %v76 = vld [vmem:[%s2 + $0x4] sm:$0xf]
  %v77 = vld [vmem:[%s2 + $0x8] sm:$0xf]
  %v78 = vld [vmem:[%s2 + $0xc] sm:$0xf]
  %v79 = vld [vmem:[%s2 + $0x10] sm:$0xf]
  %v80 = vld [vmem:[%s2 + $0x14] sm:$0xf]
  %v81 = vld [vmem:[%s2 + $0x18] sm:$0xf]
  %v82 = vld [vmem:[%s2 + $0x1c] sm:$0xf]
  %v83 = vld [vmem:[%s2 + $0x20] sm:$0xf]
  %v84 = vld [vmem:[%s2 + $0x24] sm:$0xf]
  %v85 = vld [vmem:[%s2 + $0x28] sm:$0xf]
  %v86 = vld [vmem:[%s2 + $0x2c] sm:$0xf]
  %v87 = vld [vmem:[%s2 + $0x30] sm:$0xf]
  %v88 = vld [vmem:[%s2 + $0x34] sm:$0xf]
  %v89 = vld [vmem:[%s2 + $0x38] sm:$0xf]
  %v90 = vld [vmem:[%s2 + $0x3c] sm:$0xf]
  %v107 = vunpack.c.l.b16 %v59
  %v108 = vunpack.c.l.b16 %v60
  %v109 = vunpack.c.l.b16 %v61
  %v110 = vunpack.c.l.b16 %v62
  %v111 = vunpack.c.l.b16 %v63
  %v112 = vunpack.c.l.b16 %v64
  %v113 = vunpack.c.l.b16 %v65
  %v114 = vunpack.c.l.b16 %v66
  %v115 = vunpack.c.l.b16 %v67
  %v116 = vunpack.c.l.b16 %v68
  %v117 = vunpack.c.l.b16 %v69
  %v118 = vunpack.c.l.b16 %v70
  %v119 = vunpack.c.l.b16 %v71
  %v120 = vunpack.c.l.b16 %v72
  %v121 = vunpack.c.l.b16 %v73
  %v122 = vunpack.c.l.b16 %v74
  %v123 = vpack.c.b16 %v108, %v107
  %v124 = vpack.c.b16 %v110, %v109
  %v125 = vpack.c.b16 %v112, %v111
  %v126 = vpack.c.b16 %v114, %v113
  %v127 = vpack.c.b16 %v116, %v115
  %v128 = vpack.c.b16 %v118, %v117
  %v129 = vpack.c.b16 %v120, %v119
  %v130 = vpack.c.b16 %v122, %v121
  %v155 = vunpack.c.l.b16 %v75
  %v156 = vunpack.c.l.b16 %v76
  %v157 = vunpack.c.l.b16 %v77
  %v158 = vunpack.c.l.b16 %v78
  %v159 = vunpack.c.l.b16 %v79
  %v160 = vunpack.c.l.b16 %v80
  %v161 = vunpack.c.l.b16 %v81
  %v162 = vunpack.c.l.b16 %v82
  %v163 = vunpack.c.l.b16 %v83
  %v164 = vunpack.c.l.b16 %v84
  %v165 = vunpack.c.l.b16 %v85
  %v166 = vunpack.c.l.b16 %v86
  %v167 = vunpack.c.l.b16 %v87
  %v168 = vunpack.c.l.b16 %v88
  %v169 = vunpack.c.l.b16 %v89
  %v170 = vunpack.c.l.b16 %v90
  %v171 = vpack.c.b16 %v156, %v155
  %v172 = vpack.c.b16 %v158, %v157
  %v173 = vpack.c.b16 %v160, %v159
  %v174 = vpack.c.b16 %v162, %v161
  %v175 = vpack.c.b16 %v164, %v163
  %v176 = vpack.c.b16 %v166, %v165
  %v177 = vpack.c.b16 %v168, %v167
  %v178 = vpack.c.b16 %v170, %v169
  %187 = vmatprep.subr.bf16.mxu0 0
  %188 = vmatpush1.bf16.msra.mxu0 %v171
  %189 = vmatprep.subr.bf16.mxu0 0
  %190 = vmatpush1.bf16.msra.mxu0 %v172
  %191 = vmatprep.subr.bf16.mxu0 0
  %192 = vmatpush1.bf16.msra.mxu0 %v173
  %193 = vmatprep.subr.bf16.mxu0 0
  %194 = vmatpush1.bf16.msra.mxu0 %v174
  %195 = vmatprep.subr.bf16.mxu0 0
  %196 = vmatpush1.bf16.msra.mxu0 %v175
  %197 = vmatprep.subr.bf16.mxu0 0
  %198 = vmatpush1.bf16.msra.mxu0 %v176
  %199 = vmatprep.subr.bf16.mxu0 0
  %200 = vmatpush1.bf16.msra.mxu0 %v177
  %201 = vmatprep.subr.bf16.mxu0 0
  %202 = vmatpush1.bf16.msra.mxu0 %v178
  %203 = vmatprep.subr.bf16.mxu0 0
  %204 = vmatpush1.bf16.msra.mxu0 0
  %205 = vmatprep.subr.bf16.mxu0 0
  %206 = vmatpush1.bf16.msra.mxu0 0
  %207 = vmatprep.subr.bf16.mxu0 0
  %208 = vmatpush1.bf16.msra.mxu0 0
  %209 = vmatprep.subr.bf16.mxu0 0
  %210 = vmatpush1.bf16.msra.mxu0 0
  %211 = vmatprep.subr.bf16.mxu0 0
  %212 = vmatpush1.bf16.msra.mxu0 0
  %213 = vmatprep.subr.bf16.mxu0 0
  %214 = vmatpush1.bf16.msra.mxu0 0
  %215 = vmatprep.subr.bf16.mxu0 0
  %216 = vmatpush1.bf16.msra.mxu0 0
  %217 = vmatprep.subr.bf16.mxu0 0
  %218 = vmatpush1.bf16.msra.mxu0 0
  %219 = vmatprep.mubr.bf16.mxu0 0
  %220 = vmatmul.mubr.bf16.gmra.mrb[0].mxu0 %v123
  %v221 = vpop.f32.mrb[0].mxu0
  %v222 = vadd.f32 0.0, %v221
  %v223 = vpop.f32.mrb[0].mxu0
  %v224 = vpop.f32.mrb[0].mxu0
  %v225 = vadd.f32 0.0, %v224
  %v226 = vpop.f32.mrb[0].mxu0
  %227 = vmatprep.mubr.bf16.mxu0 0
  %228 = vmatmul.mubr.bf16.gmra.mrb[0].mxu0 %v124
  %v229 = vpop.f32.mrb[0].mxu0
  %v230 = vadd.f32 0.0, %v229
  %v231 = vpop.f32.mrb[0].mxu0
  %v232 = vpop.f32.mrb[0].mxu0
  %v233 = vadd.f32 0.0, %v232
  %v234 = vpop.f32.mrb[0].mxu0
  %235 = vmatprep.mubr.bf16.mxu0 0
  %236 = vmatmul.mubr.bf16.gmra.mrb[0].mxu0 %v125
  %v237 = vpop.f32.mrb[0].mxu0
  %v238 = vadd.f32 0.0, %v237
  %v239 = vpop.f32.mrb[0].mxu0
  %v240 = vpop.f32.mrb[0].mxu0
  %v241 = vadd.f32 0.0, %v240
  %v242 = vpop.f32.mrb[0].mxu0
  %243 = vmatprep.mubr.bf16.mxu0 0
  %244 = vmatmul.mubr.bf16.gmra.mrb[0].mxu0 %v126
  %v245 = vpop.f32.mrb[0].mxu0
  %v246 = vadd.f32 0.0, %v245
  %v247 = vpop.f32.mrb[0].mxu0
  %v248 = vpop.f32.mrb[0].mxu0
  %v249 = vadd.f32 0.0, %v248
  %v250 = vpop.f32.mrb[0].mxu0
  %251 = vmatprep.mubr.bf16.mxu0 0
  %252 = vmatmul.mubr.bf16.gmra.mrb[0].mxu0 %v127
  %v253 = vpop.f32.mrb[0].mxu0
  %v254 = vadd.f32 0.0, %v253
  %v255 = vpop.f32.mrb[0].mxu0
  %v256 = vpop.f32.mrb[0].mxu0
  %v257 = vadd.f32 0.0, %v256
  %v258 = vpop.f32.mrb[0].mxu0
  %259 = vmatprep.mubr.bf16.mxu0 0
  %260 = vmatmul.mubr.bf16.gmra.mrb[0].mxu0 %v128
  %v261 = vpop.f32.mrb[0].mxu0
  %v262 = vadd.f32 0.0, %v261
  %v263 = vpop.f32.mrb[0].mxu0
  %v264 = vpop.f32.mrb[0].mxu0
  %v265 = vadd.f32 0.0, %v264
  %v266 = vpop.f32.mrb[0].mxu0
  %267 = vmatprep.mubr.bf16.mxu0 0
  %268 = vmatmul.mubr.bf16.gmra.mrb[0].mxu0 %v129
  %v269 = vpop.f32.mrb[0].mxu0
  %v270 = vadd.f32 0.0, %v269
  %v271 = vpop.f32.mrb[0].mxu0
  %v272 = vpop.f32.mrb[0].mxu0
  %v273 = vadd.f32 0.0, %v272
  %v274 = vpop.f32.mrb[0].mxu0
  %275 = vmatprep.mubr.bf16.mxu0 0
  %276 = vmatmul.mubr.bf16.gmra.mrb[0].mxu0 %v130
  %v277 = vpop.f32.mrb[0].mxu0
  %v278 = vadd.f32 0.0, %v277
  %v279 = vpop.f32.mrb[0].mxu0
  %v280 = vpop.f32.mrb[0].mxu0
  %v281 = vadd.f32 0.0, %v280
  %v282 = vpop.f32.mrb[0].mxu0
  %283 = vdwg.mxu0
  %v284 = vadd.f32 %v43, %v222
  %v285 = vadd.f32 %v44, %v225
  %v286 = vadd.f32 %v45, %v230
  %v287 = vadd.f32 %v46, %v233
  %v288 = vadd.f32 %v47, %v238
  %v289 = vadd.f32 %v48, %v241
  %v290 = vadd.f32 %v49, %v246
  %v291 = vadd.f32 %v50, %v249
  %v292 = vadd.f32 %v51, %v254
  %v293 = vadd.f32 %v52, %v257
  %v294 = vadd.f32 %v53, %v262
  %v295 = vadd.f32 %v54, %v265
  %v296 = vadd.f32 %v55, %v270
  %v297 = vadd.f32 %v56, %v273
  %v298 = vadd.f32 %v57, %v278
  %v299 = vadd.f32 %v58, %v281
  %300 = vst [vmem:[#allocation2] sm:$0xff] %v284
  %301 = vst [vmem:[#allocation2 + $0x8] sm:$0xff] %v285
  %302 = vst [vmem:[#allocation2 + $0x10] sm:$0xff] %v286
  %303 = vst [vmem:[#allocation2 + $0x18] sm:$0xff] %v287
  %304 = vst [vmem:[#allocation2 + $0x20] sm:$0xff] %v288
  %305 = vst [vmem:[#allocation2 + $0x28] sm:$0xff] %v289
  %306 = vst [vmem:[#allocation2 + $0x30] sm:$0xff] %v290
  %307 = vst [vmem:[#allocation2 + $0x38] sm:$0xff] %v291
  %308 = vst [vmem:[#allocation2 + $0x40] sm:$0xff] %v292
  %309 = vst [vmem:[#allocation2 + $0x48] sm:$0xff] %v293
  %310 = vst [vmem:[#allocation2 + $0x50] sm:$0xff] %v294
  %311 = vst [vmem:[#allocation2 + $0x58] sm:$0xff] %v295
  %312 = vst [vmem:[#allocation2 + $0x60] sm:$0xff] %v296
  %313 = vst [vmem:[#allocation2 + $0x68] sm:$0xff] %v297
  %314 = vst [vmem:[#allocation2 + $0x70] sm:$0xff] %v298
  %315 = vst [vmem:[#allocation2 + $0x78] sm:$0xff] %v299
  // Predicated region
  $region26: #{gin_forward.3} parent=0 // pred_check
    %p316 = pneg %p23
  $region27: #{gin_forward.3} parent=0 // pred_check_branch
    %318 = sbr.rel (%p316) target = $region29
  $region28: #{gin_forward.3} parent=0 // pred_region
    %s319 = sld [smem:[#allocation4]]
    %v320 = vld [vmem:[%s3] sm:$0xff]
    %v321 = vld [vmem:[%s3 + $0x8] sm:$0xff]
    %v322 = vld [vmem:[%s3 + $0x10] sm:$0xff]
    %v323 = vld [vmem:[%s3 + $0x18] sm:$0xff]
    %v324 = vld [vmem:[%s3 + $0x20] sm:$0xff]
    %v325 = vld [vmem:[%s3 + $0x28] sm:$0xff]
    %v326 = vld [vmem:[%s3 + $0x30] sm:$0xff]
    %v327 = vld [vmem:[%s3 + $0x38] sm:$0xff]
    %v328 = vld [vmem:[%s3 + $0x40] sm:$0xff]
    %v329 = vld [vmem:[%s3 + $0x48] sm:$0xff]
    %v330 = vld [vmem:[%s3 + $0x50] sm:$0xff]
    %v331 = vld [vmem:[%s3 + $0x58] sm:$0xff]
    %v332 = vld [vmem:[%s3 + $0x60] sm:$0xff]
    %v333 = vld [vmem:[%s3 + $0x68] sm:$0xff]
    %v334 = vld [vmem:[%s3 + $0x70] sm:$0xff]
    %v335 = vld [vmem:[%s3 + $0x78] sm:$0xff]
    %v336 = vstv %s319
    %v337 = vmul.f32 %v336, %v320
    %v338 = vmul.f32 %v336, %v321
    %v339 = vmul.f32 %v336, %v322
    %v340 = vmul.f32 %v336, %v323
    %v341 = vmul.f32 %v336, %v324
    %v342 = vmul.f32 %v336, %v325
    %v343 = vmul.f32 %v336, %v326
    %v344 = vmul.f32 %v336, %v327
    %v345 = vmul.f32 %v336, %v328
    %v346 = vmul.f32 %v336, %v329
    %v347 = vmul.f32 %v336, %v330
    %v348 = vmul.f32 %v336, %v331
    %v349 = vmul.f32 %v336, %v332
    %v350 = vmul.f32 %v336, %v333
    %v351 = vmul.f32 %v336, %v334
    %v352 = vmul.f32 %v336, %v335
    %v353 = vadd.f32 %v337, 1.0
    %v354 = vadd.f32 %v338, 1.0
    %v355 = vadd.f32 %v339, 1.0
    %v356 = vadd.f32 %v340, 1.0
    %v357 = vadd.f32 %v341, 1.0
    %v358 = vadd.f32 %v342, 1.0
    %v359 = vadd.f32 %v343, 1.0
    %v360 = vadd.f32 %v344, 1.0
    %v361 = vadd.f32 %v345, 1.0
    %v362 = vadd.f32 %v346, 1.0
    %v363 = vadd.f32 %v347, 1.0
    %v364 = vadd.f32 %v348, 1.0
    %v365 = vadd.f32 %v349, 1.0
    %v366 = vadd.f32 %v350, 1.0
    %v367 = vadd.f32 %v351, 1.0
    %v368 = vadd.f32 %v352, 1.0
    %v369 = vld [vmem:[#allocation2] sm:$0xff]
    %v370 = vld [vmem:[#allocation2 + $0x8] sm:$0xff]
    %v371 = vld [vmem:[#allocation2 + $0x10] sm:$0xff]
    %v372 = vld [vmem:[#allocation2 + $0x18] sm:$0xff]
    %v373 = vld [vmem:[#allocation2 + $0x20] sm:$0xff]
    %v374 = vld [vmem:[#allocation2 + $0x28] sm:$0xff]
    %v375 = vld [vmem:[#allocation2 + $0x30] sm:$0xff]
    %v376 = vld [vmem:[#allocation2 + $0x38] sm:$0xff]
    %v377 = vld [vmem:[#allocation2 + $0x40] sm:$0xff]
    %v378 = vld [vmem:[#allocation2 + $0x48] sm:$0xff]
    %v379 = vld [vmem:[#allocation2 + $0x50] sm:$0xff]
    %v380 = vld [vmem:[#allocation2 + $0x58] sm:$0xff]
    %v381 = vld [vmem:[#allocation2 + $0x60] sm:$0xff]
    %v382 = vld [vmem:[#allocation2 + $0x68] sm:$0xff]
    %v383 = vld [vmem:[#allocation2 + $0x70] sm:$0xff]
    %v384 = vld [vmem:[#allocation2 + $0x78] sm:$0xff]
    %v385 = vadd.f32 %v353, %v369
    %v386 = vadd.f32 %v354, %v370
    %v387 = vadd.f32 %v355, %v371
    %v388 = vadd.f32 %v356, %v372
    %v389 = vadd.f32 %v357, %v373
    %v390 = vadd.f32 %v358, %v374
    %v391 = vadd.f32 %v359, %v375
    %v392 = vadd.f32 %v360, %v376
    %v393 = vadd.f32 %v361, %v377
    %v394 = vadd.f32 %v362, %v378
    %v395 = vadd.f32 %v363, %v379
    %v396 = vadd.f32 %v364, %v380
    %v397 = vadd.f32 %v365, %v381
    %v398 = vadd.f32 %v366, %v382
    %v399 = vadd.f32 %v367, %v383
    %v400 = vadd.f32 %v368, %v384
    %v401 = vld [vmem:[%s4] sm:$0xff]
    %v402 = vld [vmem:[%s4 + $0x8] sm:$0xff]
    %v403 = vld [vmem:[%s4 + $0x10] sm:$0xff]
    %v404 = vld [vmem:[%s4 + $0x18] sm:$0xff]
    %v405 = vld [vmem:[%s4 + $0x20] sm:$0xff]
    %v406 = vld [vmem:[%s4 + $0x28] sm:$0xff]
    %v407 = vld [vmem:[%s4 + $0x30] sm:$0xff]
    %v408 = vld [vmem:[%s4 + $0x38] sm:$0xff]
    %v409 = vld [vmem:[%s4 + $0x40] sm:$0xff]
    %v410 = vld [vmem:[%s4 + $0x48] sm:$0xff]
    %v411 = vld [vmem:[%s4 + $0x50] sm:$0xff]
    %v412 = vld [vmem:[%s4 + $0x58] sm:$0xff]
    %v413 = vld [vmem:[%s4 + $0x60] sm:$0xff]
    %v414 = vld [vmem:[%s4 + $0x68] sm:$0xff]
    %v415 = vld [vmem:[%s4 + $0x70] sm:$0xff]
    %v416 = vld [vmem:[%s4 + $0x78] sm:$0xff]
    %v417 = vld [vmem:[%s5] sm:$0x1]
    %v419 = vlaneseq
    %v420 = vshrl.u32 %v419, 7
    %v421 = vsub.s32 0, %v420
    %v422 = vrot.slane %v417, %v421
    %424 = vmatprep.subr.mxu0 0.0
    %425 = vmatpush1.msra.mxu0 %v401
    %426 = vmatprep.subr.mxu0 0.0
    %427 = vmatpush1.msra.mxu0 %v402
    %428 = vmatprep.subr.mxu0 0.0
    %429 = vmatpush1.msra.mxu0 %v403
    %430 = vmatprep.subr.mxu0 0.0
    %431 = vmatpush1.msra.mxu0 %v404
    %432 = vmatprep.subr.mxu0 0.0
    %433 = vmatpush1.msra.mxu0 %v405
    %434 = vmatprep.subr.mxu0 0.0
    %435 = vmatpush1.msra.mxu0 %v406
    %436 = vmatprep.subr.mxu0 0.0
    %437 = vmatpush1.msra.mxu0 %v407
    %438 = vmatprep.subr.mxu0 0.0
    %439 = vmatpush1.msra.mxu0 %v408
    %440 = vmatprep.subr.mxu0 0.0
    %441 = vmatpush1.msra.mxu0 %v409
    %442 = vmatprep.subr.mxu0 0.0
    %443 = vmatpush1.msra.mxu0 %v410
    %444 = vmatprep.subr.mxu0 0.0
    %445 = vmatpush1.msra.mxu0 %v411
    %446 = vmatprep.subr.mxu0 0.0
    %447 = vmatpush1.msra.mxu0 %v412
    %448 = vmatprep.subr.mxu0 0.0
    %449 = vmatpush1.msra.mxu0 %v413
    %450 = vmatprep.subr.mxu0 0.0
    %451 = vmatpush1.msra.mxu0 %v414
    %452 = vmatprep.subr.mxu0 0.0
    %453 = vmatpush1.msra.mxu0 %v415
    %454 = vmatprep.subr.mxu0 0.0
    %455 = vmatpush1.msra.mxu0 %v416
    %456 = vmatprep.subr.mxu0 0.0
    %457 = vmatpush1.msra.mxu0 0.0
    %458 = vmatprep.subr.mxu0 0.0
    %459 = vmatpush1.msra.mxu0 0.0
    %460 = vmatprep.subr.mxu0 0.0
    %461 = vmatpush1.msra.mxu0 0.0
    %462 = vmatprep.subr.mxu0 0.0
    %463 = vmatpush1.msra.mxu0 0.0
    %464 = vmatprep.subr.mxu0 0.0
    %465 = vmatpush1.msra.mxu0 0.0
    %466 = vmatprep.subr.mxu0 0.0
    %467 = vmatpush1.msra.mxu0 0.0
    %468 = vmatprep.subr.mxu0 0.0
    %469 = vmatpush1.msra.mxu0 0.0
    %470 = vmatprep.subr.mxu0 0.0
    %471 = vmatpush1.msra.mxu0 0.0
    %472 = vmatprep.subr.mxu0 0.0
    %473 = vmatpush1.msra.mxu0 0.0
    %474 = vmatprep.subr.mxu0 0.0
    %475 = vmatpush1.msra.mxu0 0.0
    %476 = vmatprep.subr.mxu0 0.0
    %477 = vmatpush1.msra.mxu0 0.0
    %478 = vmatprep.subr.mxu0 0.0
    %479 = vmatpush1.msra.mxu0 0.0
    %480 = vmatprep.subr.mxu0 0.0
    %481 = vmatpush1.msra.mxu0 0.0
    %482 = vmatprep.subr.mxu0 0.0
    %483 = vmatpush1.msra.mxu0 0.0
    %484 = vmatprep.subr.mxu0 0.0
    %485 = vmatpush1.msra.mxu0 0.0
    %486 = vmatprep.subr.mxu0 0.0
    %487 = vmatpush1.msra.mxu0 0.0
    %488 = vmatprep.mubr.f32.mxu0 0.0
    %489 = vmatmul.mubr.f32.gmra.mrb[0].mxu0 %v385
    %v490 = vpop.f32.mrb[0].mxu0
    %v491 = vadd.f32 %v422, %v490
    %v492 = vpop.f32.mrb[0].mxu0
    %493 = vmatprep.mubr.f32.mxu0 0.0
    %494 = vmatmul.mubr.f32.gmra.mrb[0].mxu0 %v386
    %v495 = vpop.f32.mrb[0].mxu0
    %v496 = vadd.f32 %v422, %v495
    %v497 = vpop.f32.mrb[0].mxu0
    %498 = vmatprep.mubr.f32.mxu0 0.0
    %499 = vmatmul.mubr.f32.gmra.mrb[0].mxu0 %v387
    %v500 = vpop.f32.mrb[0].mxu0
    %v501 = vadd.f32 %v422, %v500
    %v502 = vpop.f32.mrb[0].mxu0
    %503 = vmatprep.mubr.f32.mxu0 0.0
    %504 = vmatmul.mubr.f32.gmra.mrb[0].mxu0 %v388
    %v505 = vpop.f32.mrb[0].mxu0
    %v506 = vadd.f32 %v422, %v505
    %v507 = vpop.f32.mrb[0].mxu0
    %508 = vmatprep.mubr.f32.mxu0 0.0
    %509 = vmatmul.mubr.f32.gmra.mrb[0].mxu0 %v389
    %v510 = vpop.f32.mrb[0].mxu0
    %v511 = vadd.f32 %v422, %v510
    %v512 = vpop.f32.mrb[0].mxu0
    %513 = vmatprep.mubr.f32.mxu0 0.0
    %514 = vmatmul.mubr.f32.gmra.mrb[0].mxu0 %v390
    %v515 = vpop.f32.mrb[0].mxu0
    %v516 = vadd.f32 %v422, %v515
    %v517 = vpop.f32.mrb[0].mxu0
    %518 = vmatprep.mubr.f32.mxu0 0.0
    %519 = vmatmul.mubr.f32.gmra.mrb[0].mxu0 %v391
    %v520 = vpop.f32.mrb[0].mxu0
    %v521 = vadd.f32 %v422, %v520
    %v522 = vpop.f32.mrb[0].mxu0
    %523 = vmatprep.mubr.f32.mxu0 0.0
    %524 = vmatmul.mubr.f32.gmra.mrb[0].mxu0 %v392
    %v525 = vpop.f32.mrb[0].mxu0
    %v526 = vadd.f32 %v422, %v525
    %v527 = vpop.f32.mrb[0].mxu0
    %528 = vmatprep.mubr.f32.mxu0 0.0
    %529 = vmatmul.mubr.f32.gmra.mrb[0].mxu0 %v393
    %v530 = vpop.f32.mrb[0].mxu0
    %v531 = vadd.f32 %v422, %v530
    %v532 = vpop.f32.mrb[0].mxu0
    %533 = vmatprep.mubr.f32.mxu0 0.0
    %534 = vmatmul.mubr.f32.gmra.mrb[0].mxu0 %v394
    %v535 = vpop.f32.mrb[0].mxu0
    %v536 = vadd.f32 %v422, %v535
    %v537 = vpop.f32.mrb[0].mxu0
    %538 = vmatprep.mubr.f32.mxu0 0.0
    %539 = vmatmul.mubr.f32.gmra.mrb[0].mxu0 %v395
    %v540 = vpop.f32.mrb[0].mxu0
    %v541 = vadd.f32 %v422, %v540
    %v542 = vpop.f32.mrb[0].mxu0
    %543 = vmatprep.mubr.f32.mxu0 0.0
    %544 = vmatmul.mubr.f32.gmra.mrb[0].mxu0 %v396
    %v545 = vpop.f32.mrb[0].mxu0
    %v546 = vadd.f32 %v422, %v545
    %v547 = vpop.f32.mrb[0].mxu0
    %548 = vmatprep.mubr.f32.mxu0 0.0
    %549 = vmatmul.mubr.f32.gmra.mrb[0].mxu0 %v397
    %v550 = vpop.f32.mrb[0].mxu0
    %v551 = vadd.f32 %v422, %v550
    %v552 = vpop.f32.mrb[0].mxu0
    %553 = vmatprep.mubr.f32.mxu0 0.0
    %554 = vmatmul.mubr.f32.gmra.mrb[0].mxu0 %v398
    %v555 = vpop.f32.mrb[0].mxu0
    %v556 = vadd.f32 %v422, %v555
    %v557 = vpop.f32.mrb[0].mxu0
    %558 = vmatprep.mubr.f32.mxu0 0.0
    %559 = vmatmul.mubr.f32.gmra.mrb[0].mxu0 %v399
    %v560 = vpop.f32.mrb[0].mxu0
    %v561 = vadd.f32 %v422, %v560
    %v562 = vpop.f32.mrb[0].mxu0
    %563 = vmatprep.mubr.f32.mxu0 0.0
    %564 = vmatmul.mubr.f32.gmra.mrb[0].mxu0 %v400
    %v565 = vpop.f32.mrb[0].mxu0
    %v566 = vadd.f32 %v422, %v565
    %v567 = vpop.f32.mrb[0].mxu0
    %568 = vdwg.mxu0
    %v569 = vmax.f32 %v491, 0.0
    %v570 = vmax.f32 %v496, 0.0
    %v571 = vmax.f32 %v501, 0.0
    %v572 = vmax.f32 %v506, 0.0
    %v573 = vmax.f32 %v511, 0.0
    %v574 = vmax.f32 %v516, 0.0
    %v575 = vmax.f32 %v521, 0.0
    %v576 = vmax.f32 %v526, 0.0
    %v577 = vmax.f32 %v531, 0.0
    %v578 = vmax.f32 %v536, 0.0
    %v579 = vmax.f32 %v541, 0.0
    %v580 = vmax.f32 %v546, 0.0
    %v581 = vmax.f32 %v551, 0.0
    %v582 = vmax.f32 %v556, 0.0
    %v583 = vmax.f32 %v561, 0.0
    %v584 = vmax.f32 %v566, 0.0
    %585 = vst [vmem:[%s6] sm:$0xff] %v569
    %586 = vst [vmem:[%s6 + $0x8] sm:$0xff] %v570
    %587 = vst [vmem:[%s6 + $0x10] sm:$0xff] %v571
    %588 = vst [vmem:[%s6 + $0x18] sm:$0xff] %v572
    %589 = vst [vmem:[%s6 + $0x20] sm:$0xff] %v573
    %590 = vst [vmem:[%s6 + $0x28] sm:$0xff] %v574
    %591 = vst [vmem:[%s6 + $0x30] sm:$0xff] %v575
    %592 = vst [vmem:[%s6 + $0x38] sm:$0xff] %v576
    %593 = vst [vmem:[%s6 + $0x40] sm:$0xff] %v577
    %594 = vst [vmem:[%s6 + $0x48] sm:$0xff] %v578
    %595 = vst [vmem:[%s6 + $0x50] sm:$0xff] %v579
    %596 = vst [vmem:[%s6 + $0x58] sm:$0xff] %v580
    %597 = vst [vmem:[%s6 + $0x60] sm:$0xff] %v581
    %598 = vst [vmem:[%s6 + $0x68] sm:$0xff] %v582
    %599 = vst [vmem:[%s6 + $0x70] sm:$0xff] %v583
    %600 = vst [vmem:[%s6 + $0x78] sm:$0xff] %v584
  $region29: #{gin_forward.3} parent=0 // pred_fallthru
    _
  // Predicated region
  $region30: #{gin_forward.3} parent=0 // pred_check
    _
  $region31: #{gin_forward.3} parent=0 // pred_check_branch
    %602 = sbr.rel (0) target = $region33
  $region32: #{gin_forward.3} parent=0 // pred_region
    _
  $region33: #{gin_forward.3} parent=0 // pred_fallthru
    _
  // Predicated region
  $region34: #{gin_forward.3} parent=0 // pred_check
    _
  $region35: #{gin_forward.3} parent=0 // pred_check_branch
    %604 = sbr.rel (0) target = $region37
  $region36: #{gin_forward.3} parent=0 // pred_region
    _
  $region37: #{gin_forward.3} parent=0 // pred_fallthru
    _

</llo_original>
